<compile_context>
chip_gen: v6e
topology: v6e:2x2x1
jax: 0.10.0
libtpu: 0.0.40
codegen_flags: <defaults>
</compile_context>

<pallas_src>
import jax
import jax.numpy as jnp
from jax.experimental import pallas as pl
from jax.experimental.pallas import tpu as pltpu


def _cdiv(a, b):
    return -(-a // b)


def _round_up(a, b):
    return _cdiv(a, b) * b


def _psnr_partial_kernel(a_ref, b_ref, m_ref, sq_out_ref, m_out_ref,
                         sq_acc, m_acc):
    k = pl.program_id(1)

    @pl.when(k == 0)
    def _():
        sq_acc[...] = jnp.zeros_like(sq_acc)
        m_acc[...] = jnp.zeros_like(m_acc)

    # Cast + clip inside the kernel (inputs may arrive bf16/fp16/bool); VPU
    # work hidden under the streaming DMAs now that every block is dense.
    a = jnp.clip(a_ref[...].astype(jnp.float32), 0.0, 1.0)   # (B, C, ts, 128)
    b = jnp.clip(b_ref[...].astype(jnp.float32), 0.0, 1.0)   # (B, C, ts, 128)
    m = m_ref[...].astype(jnp.float32)                        # (B, ts, 128)

    # (a*m - b*m)^2 == (a-b)^2 * m^2 : reduce over C first (outer axis ->
    # plain dense VPU adds), then one mask multiply per (B, ts, 128) element.
    # m*m (not m) is required to stay correct for non-binary masks.
    d = a - b
    sq_acc[...] += jnp.sum(d * d, axis=1) * (m * m)           # elementwise +=
    m_acc[...] += m

    @pl.when(k == pl.num_programs(1) - 1)
    def _():
        # Single cross-sublane reduce per shard; lane-dense (1, B, 128) output.
        sq_out_ref[...] = jnp.sum(sq_acc[...], axis=1)[None]
        m_out_ref[...] = jnp.sum(m_acc[...], axis=1)[None]


def _plan_tiling(hw, batch, chans, itemsize, target_bytes=4 * 1024 * 1024):
    """Choose (ts, num_par, tiles_per, S) with S = num_par * tiles_per * ts.

    ts is the sublane extent of each (B, C, ts, 128) block (multiple of 8),
    budgeted so one image block is ~<= target_bytes in the input dtype.
    Prefers an exact factorization of S (no wrapper pad copy); otherwise pads.
    """
    s_needed = _cdiv(hw, 128)
    ts_budget = max(8, (target_bytes // (batch * chans * 128 * itemsize)) // 8 * 8)

    if hw % 128 == 0:
        for num_par in (2, 1):
            ts_max = min(ts_budget, (s_needed // num_par) // 8 * 8)
            for ts in range(ts_max, 7, -8):
                if s_needed % (num_par * ts) == 0:
                    return ts, num_par, s_needed // (num_par * ts), s_needed

    # Fallback: zero-pad H*W (padding contributes 0 to both masked sums).
    num_par = 2 if s_needed >= 16 else 1
    per_core = _cdiv(s_needed, num_par)
    tiles_per = max(1, _cdiv(per_core, ts_budget))
    ts = _round_up(_cdiv(per_core, tiles_per), 8)
    return ts, num_par, tiles_per, num_par * tiles_per * ts


def psnr_metric(image_a, image_b, mask, max_intensity: float = 1.0,
                sublane_tile: int | None = None, num_par: int | None = None):
    """image_a, image_b: (B, C, H, W); mask: (B, 1, H, W). Returns mean PSNR."""
    B, C, H, W = image_a.shape
    assert image_b.shape == (B, C, H, W)
    assert mask.shape == (B, 1, H, W)
    hw = H * W
    itemsize = jnp.dtype(image_a.dtype).itemsize

    ts, npar, tiles_per, S = _plan_tiling(hw, B, C, itemsize)
    if sublane_tile is not None or num_par is not None:   # test/tuning override
        ts = sublane_tile if sublane_tile is not None else ts
        npar = num_par if num_par is not None else npar
        assert ts % 8 == 0
        tiles_per = max(1, _cdiv(_cdiv(hw, 128), npar * ts))
        S = npar * tiles_per * ts
    hwp = S * 128

    def to_blocks(x, lead):
        x = x.reshape(lead + (hw,))
        if hwp != hw:
            x = jnp.pad(x, [(0, 0)] * len(lead) + [(0, hwp - hw)])
        return x.reshape(lead + (S, 128))

    a4 = to_blocks(image_a, (B, C))        # (B, C, S, 128)
    b4 = to_blocks(image_b, (B, C))
    m3 = to_blocks(mask, (B,))             # mask squeezed -> (B, S, 128)

    img_map = lambda p, k: (0, 0, p * tiles_per + k, 0)
    msk_map = lambda p, k: (0, p * tiles_per + k, 0)
    out_map = lambda p, k: (p, 0, 0)

    sq_part, m_part = pl.pallas_call(
        _psnr_partial_kernel,
        out_shape=(
            jax.ShapeDtypeStruct((npar, B, 128), jnp.float32),
            jax.ShapeDtypeStruct((npar, B, 128), jnp.float32),
        ),
        grid_spec=pltpu.PrefetchScalarGridSpec(
            num_scalar_prefetch=0,
            grid=(npar, tiles_per),
            in_specs=[
                pl.BlockSpec((B, C, ts, 128), img_map),
                pl.BlockSpec((B, C, ts, 128), img_map),
                pl.BlockSpec((B, ts, 128), msk_map),
            ],
            out_specs=[
                pl.BlockSpec((1, B, 128), out_map),
                pl.BlockSpec((1, B, 128), out_map),
            ],
            scratch_shapes=[
                pltpu.VMEM((B, ts, 128), jnp.float32),
                pltpu.VMEM((B, ts, 128), jnp.float32),
            ],
        ),
        compiler_params=pltpu.CompilerParams(
            # "parallel" leading axis: v7x's two TensorCores split the shards;
            # a plain sequential loop on single-TC chips.
            dimension_semantics=("parallel", "arbitrary"),
            vmem_limit_bytes=32 * 1024 * 1024,
        ),
    )(a4, b4, m3)

    # O(B) epilogue in XLA: combine shard/lane partials, per-image MSE / PSNR
    # and the NaN-ignoring batch mean.
    sq_sum = jnp.sum(sq_part, axis=(0, 2))        # (B,)
    mask_sum = jnp.sum(m_part, axis=(0, 2))       # (B,)
    unmasked = C * mask_sum
    mse = sq_sum / unmasked
    psnr = 10.0 * jnp.log10((max_intensity * max_intensity) / mse)
    is_nan = jnp.isnan(psnr)
    total = jnp.sum(jnp.where(is_nan, 0.0, psnr))
    cnt = jnp.sum(jnp.where(is_nan, 0.0, 1.0))
    # TODO(synk): PyTorch returns None when the nanmean itself is NaN (all
    # images fully masked); here we return NaN in that case.
    return total / cnt


def _psnr_reference(image_a, image_b, mask, max_intensity: float = 1.0):
    """Pure-JAX reference mirroring the PyTorch module, for verification."""
    a = jnp.clip(image_a.astype(jnp.float32), 0.0, 1.0)
    b = jnp.clip(image_b.astype(jnp.float32), 0.0, 1.0)
    m = mask.astype(jnp.float32)
    am, bm = a * m, b * m
    unmasked = a.shape[1] * jnp.sum(jnp.squeeze(m, axis=1), axis=(1, 2))
    mse = jnp.sum((am - bm) ** 2, axis=(1, 2, 3)) / unmasked
    psnr = 10.0 * jnp.log10(max_intensity ** 2 / mse)
    is_nan = jnp.isnan(psnr)
    return jnp.sum(jnp.where(is_nan, 0.0, psnr)) / jnp.sum(~is_nan)


if __name__ == "__main__":
    key = jax.random.PRNGKey(0)
    k1, k2, k3, k4, k5, k6 = jax.random.split(key, 6)

    # --- small test (padded single-tile path, C=4) ---
    B, C, H, W = 2, 4, 16, 16
    image_a = jax.random.uniform(k1, (B, C, H, W), dtype=jnp.float32,
                                 minval=-0.2, maxval=1.2)
    image_b = jax.random.uniform(k2, (B, C, H, W), dtype=jnp.float32,
                                 minval=-0.2, maxval=1.2)
    mask = jax.random.bernoulli(k3, p=0.7, shape=(B, 1, H, W)).astype(jnp.float32)

    out = jax.block_until_ready(psnr_metric(image_a, image_b, mask, 1.0))
    ref = _psnr_reference(image_a, image_b, mask, 1.0)
    assert jnp.allclose(out, ref, rtol=1e-5, atol=1e-4), (out, ref)

    # --- multi-tile / two-shard accumulation path (forced small tile),
    #     C=3 and one fully-masked image (NaN exclusion in the batch mean) ---
    B2, C2, H2, W2 = 2, 3, 32, 128
    ia = jax.random.uniform(k4, (B2, C2, H2, W2), dtype=jnp.float32,
                            minval=-0.2, maxval=1.2)
    ib = jax.random.uniform(k5, (B2, C2, H2, W2), dtype=jnp.float32,
                            minval=-0.2, maxval=1.2)
    mk = jax.random.bernoulli(k6, p=0.7, shape=(B2, 1, H2, W2)).astype(jnp.float32)
    mk = mk.at[0].set(0.0)   # image 0 fully masked -> NaN PSNR, excluded

    out2 = jax.block_until_ready(
        psnr_metric(ia, ib, mk, 1.0, sublane_tile=8, num_par=2))
    ref2 = _psnr_reference(ia, ib, mk, 1.0)
    assert jnp.allclose(out2, ref2, rtol=1e-5, atol=1e-4), (out2, ref2)

    print("KERNEL_OK")
</pallas_src>

<mosaic_0001>
module attributes {stable_mosaic.version = 11 : i64} {
  func.func @_psnr_partial_kernel(%arg0: i32, %arg1: i32, %arg2: memref<2x4x8x128xf32, #tpu.memory_space<vmem>>, %arg3: memref<2x4x8x128xf32, #tpu.memory_space<vmem>>, %arg4: memref<2x8x128xf32, #tpu.memory_space<vmem>>, %arg5: memref<1x2x128xf32, #tpu.memory_space<vmem>>, %arg6: memref<1x2x128xf32, #tpu.memory_space<vmem>>, %arg7: memref<2x8x128xf32, #tpu.memory_space<vmem>>, %arg8: memref<2x8x128xf32, #tpu.memory_space<vmem>>) attributes {dimension_semantics = [#tpu.dimension_semantics<parallel>, #tpu.dimension_semantics<arbitrary>], iteration_bounds = array<i64: 1, 1>, scalar_prefetch = 0 : i64, scratch_operands = 2 : i64, tpu.core_type = #tpu.core_type<tc>, window_params = [{transform_indices = @transform_0, window_bounds = array<i64: 2, 4, 8, 128>}, {transform_indices = @transform_1, window_bounds = array<i64: 2, 4, 8, 128>}, {transform_indices = @transform_2, window_bounds = array<i64: 2, 8, 128>}, {transform_indices = @transform_3, window_bounds = array<i64: 1, 2, 128>}, {transform_indices = @transform_4, window_bounds = array<i64: 1, 2, 128>}]} {
    %c0_i32 = arith.constant 0 : i32
    %0 = arith.cmpi eq, %arg1, %c0_i32 : i32
    %1 = arith.extui %0 : i1 to i32
    %c0_i32_0 = arith.constant 0 : i32
    %2 = arith.cmpi ne, %1, %c0_i32_0 : i32
    scf.if %2 {
      %cst_29 = arith.constant 0.000000e+00 : f32
      %28 = vector.broadcast %cst_29 : f32 to vector<2x8x128xf32>
      %c0_30 = arith.constant 0 : index
      %c0_31 = arith.constant 0 : index
      %c0_32 = arith.constant 0 : index
      %29 = vector.load %arg7[%c0_30, %c0_31, %c0_32] : memref<2x8x128xf32, #tpu.memory_space<vmem>>, vector<2x8x128xf32>
      tpu.vector_store %arg7[%c0_30, %c0_31, %c0_32], %28 {strides = array<i32>} : memref<2x8x128xf32, #tpu.memory_space<vmem>>, vector<2x8x128xf32>,
      %cst_33 = arith.constant 0.000000e+00 : f32
      %30 = vector.broadcast %cst_33 : f32 to vector<2x8x128xf32>
      %c0_34 = arith.constant 0 : index
      %c0_35 = arith.constant 0 : index
      %c0_36 = arith.constant 0 : index
      %31 = vector.load %arg8[%c0_34, %c0_35, %c0_36] : memref<2x8x128xf32, #tpu.memory_space<vmem>>, vector<2x8x128xf32>
      tpu.vector_store %arg8[%c0_34, %c0_35, %c0_36], %30 {strides = array<i32>} : memref<2x8x128xf32, #tpu.memory_space<vmem>>, vector<2x8x128xf32>,
    } else {
    }
    %c0 = arith.constant 0 : index
    %c0_1 = arith.constant 0 : index
    %c0_2 = arith.constant 0 : index
    %c0_3 = arith.constant 0 : index
    %3 = vector.load %arg2[%c0, %c0_1, %c0_2, %c0_3] : memref<2x4x8x128xf32, #tpu.memory_space<vmem>>, vector<2x4x8x128xf32>
    %cst = arith.constant 0.000000e+00 : f32
    %cst_4 = arith.constant 1.000000e+00 : f32
    %4 = vector.broadcast %cst : f32 to vector<2x4x8x128xf32>
    %5 = arith.maximumf %4, %3 : vector<2x4x8x128xf32>
    %6 = vector.broadcast %cst_4 : f32 to vector<2x4x8x128xf32>
    %7 = arith.minimumf %6, %5 : vector<2x4x8x128xf32>
    %c0_5 = arith.constant 0 : index
    %c0_6 = arith.constant 0 : index
    %c0_7 = arith.constant 0 : index
    %c0_8 = arith.constant 0 : index
    %8 = vector.load %arg3[%c0_5, %c0_6, %c0_7, %c0_8] : memref<2x4x8x128xf32, #tpu.memory_space<vmem>>, vector<2x4x8x128xf32>
    %cst_9 = arith.constant 0.000000e+00 : f32
    %cst_10 = arith.constant 1.000000e+00 : f32
    %9 = vector.broadcast %cst_9 : f32 to vector<2x4x8x128xf32>
    %10 = arith.maximumf %9, %8 : vector<2x4x8x128xf32>
    %11 = vector.broadcast %cst_10 : f32 to vector<2x4x8x128xf32>
    %12 = arith.minimumf %11, %10 : vector<2x4x8x128xf32>
    %c0_11 = arith.constant 0 : index
    %c0_12 = arith.constant 0 : index
    %c0_13 = arith.constant 0 : index
    %13 = vector.load %arg4[%c0_11, %c0_12, %c0_13] : memref<2x8x128xf32, #tpu.memory_space<vmem>>, vector<2x8x128xf32>
    %14 = arith.subf %7, %12 : vector<2x4x8x128xf32>
    %c0_14 = arith.constant 0 : index
    %c0_15 = arith.constant 0 : index
    %c0_16 = arith.constant 0 : index
    %15 = vector.load %arg7[%c0_14, %c0_15, %c0_16] : memref<2x8x128xf32, #tpu.memory_space<vmem>>, vector<2x8x128xf32>
    %16 = arith.mulf %14, %14 : vector<2x4x8x128xf32>
    %cst_17 = arith.constant dense<0.000000e+00> : vector<2x8x128xf32>
    %17 = vector.multi_reduction <add>, %16, %cst_17 [1] : vector<2x4x8x128xf32> to vector<2x8x128xf32>
    %18 = arith.mulf %13, %13 : vector<2x8x128xf32>
    %19 = arith.mulf %17, %18 : vector<2x8x128xf32>
    %20 = arith.addf %15, %19 : vector<2x8x128xf32>
    %c0_18 = arith.constant 0 : index
    %c0_19 = arith.constant 0 : index
    %c0_20 = arith.constant 0 : index
    %21 = vector.load %arg7[%c0_18, %c0_19, %c0_20] : memref<2x8x128xf32, #tpu.memory_space<vmem>>, vector<2x8x128xf32>
    tpu.vector_store %arg7[%c0_18, %c0_19, %c0_20], %20 {strides = array<i32>} : memref<2x8x128xf32, #tpu.memory_space<vmem>>, vector<2x8x128xf32>,
    %c0_21 = arith.constant 0 : index
    %c0_22 = arith.constant 0 : index
    %c0_23 = arith.constant 0 : index
    %22 = vector.load %arg8[%c0_21, %c0_22, %c0_23] : memref<2x8x128xf32, #tpu.memory_space<vmem>>, vector<2x8x128xf32>
    %23 = arith.addf %22, %13 : vector<2x8x128xf32>
    %c0_24 = arith.constant 0 : index
    %c0_25 = arith.constant 0 : index
    %c0_26 = arith.constant 0 : index
    %24 = vector.load %arg8[%c0_24, %c0_25, %c0_26] : memref<2x8x128xf32, #tpu.memory_space<vmem>>, vector<2x8x128xf32>
    tpu.vector_store %arg8[%c0_24, %c0_25, %c0_26], %23 {strides = array<i32>} : memref<2x8x128xf32, #tpu.memory_space<vmem>>, vector<2x8x128xf32>,
    %c0_i32_27 = arith.constant 0 : i32
    %25 = arith.cmpi eq, %arg1, %c0_i32_27 : i32
    %26 = arith.extui %25 : i1 to i32
    %c0_i32_28 = arith.constant 0 : i32
    %27 = arith.cmpi ne, %26, %c0_i32_28 : i32
    scf.if %27 {
      %c0_29 = arith.constant 0 : index
      %c0_30 = arith.constant 0 : index
      %c0_31 = arith.constant 0 : index
      %28 = vector.load %arg7[%c0_29, %c0_30, %c0_31] : memref<2x8x128xf32, #tpu.memory_space<vmem>>, vector<2x8x128xf32>
      %cst_32 = arith.constant dense<0.000000e+00> : vector<2x128xf32>
      %29 = vector.multi_reduction <add>, %28, %cst_32 [1] : vector<2x8x128xf32> to vector<2x128xf32>
      %30 = vector.shape_cast %29 : vector<2x128xf32> to vector<1x2x128xf32>
      %c0_33 = arith.constant 0 : index
      %c0_34 = arith.constant 0 : index
      %c0_35 = arith.constant 0 : index
      %31 = vector.load %arg5[%c0_33, %c0_34, %c0_35] : memref<1x2x128xf32, #tpu.memory_space<vmem>>, vector<1x2x128xf32>
      tpu.vector_store %arg5[%c0_33, %c0_34, %c0_35], %30 {strides = array<i32>} : memref<1x2x128xf32, #tpu.memory_space<vmem>>, vector<1x2x128xf32>,
      %c0_36 = arith.constant 0 : index
      %c0_37 = arith.constant 0 : index
      %c0_38 = arith.constant 0 : index
      %32 = vector.load %arg8[%c0_36, %c0_37, %c0_38] : memref<2x8x128xf32, #tpu.memory_space<vmem>>, vector<2x8x128xf32>
      %cst_39 = arith.constant dense<0.000000e+00> : vector<2x128xf32>
      %33 = vector.multi_reduction <add>, %32, %cst_39 [1] : vector<2x8x128xf32> to vector<2x128xf32>
      %34 = vector.shape_cast %33 : vector<2x128xf32> to vector<1x2x128xf32>
      %c0_40 = arith.constant 0 : index
      %c0_41 = arith.constant 0 : index
      %c0_42 = arith.constant 0 : index
      %35 = vector.load %arg6[%c0_40, %c0_41, %c0_42] : memref<1x2x128xf32, #tpu.memory_space<vmem>>, vector<1x2x128xf32>
      tpu.vector_store %arg6[%c0_40, %c0_41, %c0_42], %34 {strides = array<i32>} : memref<1x2x128xf32, #tpu.memory_space<vmem>>, vector<1x2x128xf32>,
    } else {
    }
    return
  }
  func.func @transform_0(%arg0: i32, %arg1: i32) -> (i32, i32, i32, i32) {
    %c1_i32 = arith.constant 1 : i32
    %0 = arith.muli %arg0, %c1_i32 : i32
    %1 = arith.addi %0, %arg1 : i32
    %c0_i32 = arith.constant 0 : i32
    %c0_i32_0 = arith.constant 0 : i32
    %c0_i32_1 = arith.constant 0 : i32
    %c0_i32_2 = arith.constant 0 : i32
    return %c0_i32, %c0_i32_0, %1, %c0_i32_1 : i32, i32, i32, i32
  }
  func.func @transform_1(%arg0: i32, %arg1: i32) -> (i32, i32, i32, i32) {
    %c1_i32 = arith.constant 1 : i32
    %0 = arith.muli %arg0, %c1_i32 : i32
    %1 = arith.addi %0, %arg1 : i32
    %c0_i32 = arith.constant 0 : i32
    %c0_i32_0 = arith.constant 0 : i32
    %c0_i32_1 = arith.constant 0 : i32
    %c0_i32_2 = arith.constant 0 : i32
    return %c0_i32, %c0_i32_0, %1, %c0_i32_1 : i32, i32, i32, i32
  }
  func.func @transform_2(%arg0: i32, %arg1: i32) -> (i32, i32, i32) {
    %c1_i32 = arith.constant 1 : i32
    %0 = arith.muli %arg0, %c1_i32 : i32
    %1 = arith.addi %0, %arg1 : i32
    %c0_i32 = arith.constant 0 : i32
    %c0_i32_0 = arith.constant 0 : i32
    %c0_i32_1 = arith.constant 0 : i32
    return %c0_i32, %1, %c0_i32_0 : i32, i32, i32
  }
  func.func @transform_3(%arg0: i32, %arg1: i32) -> (i32, i32, i32) {
    %c0_i32 = arith.constant 0 : i32
    %c0_i32_0 = arith.constant 0 : i32
    %c0_i32_1 = arith.constant 0 : i32
    return %arg0, %c0_i32, %c0_i32_0 : i32, i32, i32
  }
  func.func @transform_4(%arg0: i32, %arg1: i32) -> (i32, i32, i32) {
    %c0_i32 = arith.constant 0 : i32
    %c0_i32_0 = arith.constant 0 : i32
    %c0_i32_1 = arith.constant 0 : i32
    return %arg0, %c0_i32, %c0_i32_0 : i32, i32, i32
  }
}

</mosaic_0001>

<llo_original>
// kernel: tpu_custom_call.1
$region0: #{tpu_custom_call.1}
  #allocation0 [shape = 'u32[]', space=smem, size = 0x4, offset = 0x4, fixed_abs, tag = 'smem constant byte address 0x4 - core index']
  #allocation1 [shape = 'u32[144,128]{1,0:T(1,128)}', space=vmem, size = 0x12000, scoped, tag = 'internal scratch']
  #allocation2 [shape = 'f32[2,8,128]{2,1,0:T(8,128)}', space=vmem, size = 0x2000, scoped, tag = 'scratch operand']
  #allocation3 [shape = 'f32[2,8,128]{2,1,0:T(8,128)}', space=vmem, size = 0x2000, scoped, tag = 'scratch operand']
  %s0 = inlined_call_operand.hbm [shape: f32[2,4,8,128], index: 0, kind: input, shape index: {}]
  %s1 = inlined_call_operand.hbm [shape: f32[2,4,8,128], index: 1, kind: input, shape index: {}]
  %s2 = inlined_call_operand.hbm [shape: f32[2,8,128], index: 2, kind: input, shape index: {}]
  %s3 = inlined_call_operand.hbm [shape: f32[1,2,128], index: 3, kind: output, shape index: {0}]
  %s4 = inlined_call_operand.hbm [shape: f32[1,2,128], index: 4, kind: output, shape index: {1}]
  %5 = xla_tuple %s3, %s4
  %s6 = sld [smem:[#allocation0]]
  $region50: #{tpu_custom_call.1} parent=0
    _
  %s8 = ssub.s32 1, %s6
  %s9 = scalar_select 0, %s8, %s6
  $region1: #{tpu_custom_call.1} parent=0
    #allocation4 [shape = 'u8[32768]{0}', space=vmem, size = 0x8000, scoped, tag = 'input window, operand 0, single buffered']
    #allocation5 [shape = 's32[1]{0}', space=sflag, size = 0x4, scoped, tag = 'scoped memory for tpu_custom_call.1']
    #allocation6 [shape = 's32[1]{0}', space=sflag, size = 0x4, scoped, tag = 'scoped memory for tpu_custom_call.1']
    #allocation7 [shape = 'u8[32768]{0}', space=vmem, size = 0x8000, scoped, tag = 'input window, operand 1, single buffered']
    #allocation8 [shape = 's32[1]{0}', space=sflag, size = 0x4, scoped, tag = 'scoped memory for tpu_custom_call.1']
    #allocation9 [shape = 'u8[8192]{0}', space=vmem, size = 0x2000, scoped, tag = 'input window, operand 2, single buffered']
    #allocation10 [shape = 'u8[1024]{0}', space=vmem, size = 0x400, scoped, tag = 'output window, operand 0, single buffered']
    #allocation11 [shape = 'u8[1024]{0}', space=vmem, size = 0x400, scoped, tag = 'output window, operand 1, single buffered']
    #allocation12 [shape = 's32[1]{0}', space=sflag, size = 0x4, scoped, tag = 'scoped memory for tpu_custom_call.1']
    %10 = vsyncpa [#allocation5], 0
    %11 = vsyncpa [#allocation8], 0
    %12 = vsyncpa [#allocation6], 0
    %13 = vsyncpa [#allocation12], 0
    // Predicated region
    $region2: #{tpu_custom_call.1} parent=1 // pred_check
      _
    $region3: #{tpu_custom_call.1} parent=1 // pred_check_branch
      %15 = sbr.rel (0) target = $region5
    $region4: #{tpu_custom_call.1} parent=1 // pred_region
      %s16 = sadd.s32 0, 0
      %s18 = ssub.s32 1024, 1024
      %19 = vsyncadd [#allocation5], %s18
      %s20 = smul.addr %s16, 128
      %s21 = scalar_lea.hbm %s0, %s20
      %s22 = sshll.u32 [#allocation4], 4
      %s23 = int_to_ptr.vmem [resolvable:$true] %s22
      %28 = dma.hbm_to_vmem [thread:$0]  %s21, 1024, %s23, [#allocation5], 128, 128, 8
    $region5: #{tpu_custom_call.1} parent=1 // pred_fallthru
      _
    // Predicated region
    $region6: #{tpu_custom_call.1} parent=1 // pred_check
      _
    $region7: #{tpu_custom_call.1} parent=1 // pred_check_branch
      %30 = sbr.rel (0) target = $region9
    $region8: #{tpu_custom_call.1} parent=1 // pred_region
      %s31 = sadd.s32 0, 0
      %s33 = ssub.s32 1024, 1024
      %34 = vsyncadd [#allocation8], %s33
      %s35 = smul.addr %s31, 128
      %s36 = scalar_lea.hbm %s1, %s35
      %s37 = sshll.u32 [#allocation7], 4
      %s38 = int_to_ptr.vmem [resolvable:$true] %s37
      %43 = dma.hbm_to_vmem [thread:$0]  %s36, 1024, %s38, [#allocation8], 128, 128, 8
    $region9: #{tpu_custom_call.1} parent=1 // pred_fallthru
      _
    // Predicated region
    $region10: #{tpu_custom_call.1} parent=1 // pred_check
      _
    $region11: #{tpu_custom_call.1} parent=1 // pred_check_branch
      %45 = sbr.rel (0) target = $region13
    $region12: #{tpu_custom_call.1} parent=1 // pred_region
      %s46 = sadd.s32 0, 0
      %s48 = ssub.s32 256, 256
      %49 = vsyncadd [#allocation8], %s48
      %s50 = smul.addr %s46, 128
      %s51 = scalar_lea.hbm %s2, %s50
      %s52 = sshll.u32 [#allocation9], 4
      %s53 = int_to_ptr.vmem [resolvable:$true] %s52
      %58 = dma.hbm_to_vmem [thread:$0]  %s51, 256, %s53, [#allocation8], 128, 128, 8
    $region13: #{tpu_custom_call.1} parent=1 // pred_fallthru
      _
    // Predicated region
    $region14: #{tpu_custom_call.1} parent=1 // pred_check
      _
    $region15: #{tpu_custom_call.1} parent=1 // pred_check_branch
      %60 = sbr.rel (0) target = $region17
    $region16: #{tpu_custom_call.1} parent=1 // pred_region
      %61 = dma.done [#allocation5], 1024
    $region17: #{tpu_custom_call.1} parent=1 // pred_fallthru
      _
    // Predicated region
    $region18: #{tpu_custom_call.1} parent=1 // pred_check
      _
    $region19: #{tpu_custom_call.1} parent=1 // pred_check_branch
      %63 = sbr.rel (0) target = $region21
    $region20: #{tpu_custom_call.1} parent=1 // pred_region
      %64 = dma.done [#allocation8], 1024
    $region21: #{tpu_custom_call.1} parent=1 // pred_fallthru
      _
    // Predicated region
    $region22: #{tpu_custom_call.1} parent=1 // pred_check
      _
    $region23: #{tpu_custom_call.1} parent=1 // pred_check_branch
      %66 = sbr.rel (0) target = $region25
    $region24: #{tpu_custom_call.1} parent=1 // pred_region
      %67 = dma.done [#allocation8], 256
    $region25: #{tpu_custom_call.1} parent=1 // pred_fallthru
      _
    %s68 = sadd.s32 0, 0
    %s69 = sadd.s32 0, 0
    %s70 = sadd.s32 0, 0
    %p71 = scmp.eq.s32.totalorder 0, 0
    // Predicated region
    $region26: #{tpu_custom_call.1} parent=1 // pred_check
      %p72 = pneg %p71
    $region27: #{tpu_custom_call.1} parent=1 // pred_check_branch
      %74 = sbr.rel (%p72) target = $region29
    $region28: #{tpu_custom_call.1} parent=1 // pred_region
      %75 = vst [vmem:[#allocation2] sm:$0xff] 0.0
      %76 = vst [vmem:[#allocation2 + $0x8] sm:$0xff] 0.0
      %77 = vst [vmem:[#allocation3] sm:$0xff] 0.0
      %78 = vst [vmem:[#allocation3 + $0x8] sm:$0xff] 0.0
    $region29: #{tpu_custom_call.1} parent=1 // pred_fallthru
      _
    %v79 = vld [vmem:[#allocation4] sm:$0xff]
    %v80 = vld [vmem:[#allocation4 + $0x8] sm:$0xff]
    %v81 = vld [vmem:[#allocation4 + $0x10] sm:$0xff]
    %v82 = vld [vmem:[#allocation4 + $0x18] sm:$0xff]
    %v83 = vld [vmem:[#allocation4 + $0x20] sm:$0xff]
    %v84 = vld [vmem:[#allocation4 + $0x28] sm:$0xff]
    %v85 = vld [vmem:[#allocation4 + $0x30] sm:$0xff]
    %v86 = vld [vmem:[#allocation4 + $0x38] sm:$0xff]
    %v87 = vmax.f32 %v79, 0.0
    %v88 = vmax.f32 %v80, 0.0
    %v89 = vmax.f32 %v81, 0.0
    %v90 = vmax.f32 %v82, 0.0
    %v91 = vmax.f32 %v83, 0.0
    %v92 = vmax.f32 %v84, 0.0
    %v93 = vmax.f32 %v85, 0.0
    %v94 = vmax.f32 %v86, 0.0
    %v95 = vmin.f32 %v87, 1.0
    %v96 = vmin.f32 %v88, 1.0
    %v97 = vmin.f32 %v89, 1.0
    %v98 = vmin.f32 %v90, 1.0
    %v99 = vmin.f32 %v91, 1.0
    %v100 = vmin.f32 %v92, 1.0
    %v101 = vmin.f32 %v93, 1.0
    %v102 = vmin.f32 %v94, 1.0
    %v103 = vld [vmem:[#allocation7] sm:$0xff]
    %v104 = vld [vmem:[#allocation7 + $0x8] sm:$0xff]
    %v105 = vld [vmem:[#allocation7 + $0x10] sm:$0xff]
    %v106 = vld [vmem:[#allocation7 + $0x18] sm:$0xff]
    %v107 = vld [vmem:[#allocation7 + $0x20] sm:$0xff]
    %v108 = vld [vmem:[#allocation7 + $0x28] sm:$0xff]
    %v109 = vld [vmem:[#allocation7 + $0x30] sm:$0xff]
    %v110 = vld [vmem:[#allocation7 + $0x38] sm:$0xff]
    %v111 = vmax.f32 %v103, 0.0
    %v112 = vmax.f32 %v104, 0.0
    %v113 = vmax.f32 %v105, 0.0
    %v114 = vmax.f32 %v106, 0.0
    %v115 = vmax.f32 %v107, 0.0
    %v116 = vmax.f32 %v108, 0.0
    %v117 = vmax.f32 %v109, 0.0
    %v118 = vmax.f32 %v110, 0.0
    %v119 = vmin.f32 %v111, 1.0
    %v120 = vmin.f32 %v112, 1.0
    %v121 = vmin.f32 %v113, 1.0
    %v122 = vmin.f32 %v114, 1.0
    %v123 = vmin.f32 %v115, 1.0
    %v124 = vmin.f32 %v116, 1.0
    %v125 = vmin.f32 %v117, 1.0
    %v126 = vmin.f32 %v118, 1.0
    %v127 = vld [vmem:[#allocation9] sm:$0xff]
    %v128 = vld [vmem:[#allocation9 + $0x8] sm:$0xff]
    %v129 = vsub.f32 %v95, %v119
    %v130 = vsub.f32 %v96, %v120
    %v131 = vsub.f32 %v97, %v121
    %v132 = vsub.f32 %v98, %v122
    %v133 = vsub.f32 %v99, %v123
    %v134 = vsub.f32 %v100, %v124
    %v135 = vsub.f32 %v101, %v125
    %v136 = vsub.f32 %v102, %v126
    %v137 = vld [vmem:[#allocation2] sm:$0xff]
    %v138 = vld [vmem:[#allocation2 + $0x8] sm:$0xff]
    %v139 = vmul.f32 %v129, %v129
    %v140 = vmul.f32 %v130, %v130
    %v141 = vmul.f32 %v131, %v131
    %v142 = vmul.f32 %v132, %v132
    %v143 = vmul.f32 %v133, %v133
    %v144 = vmul.f32 %v134, %v134
    %v145 = vmul.f32 %v135, %v135
    %v146 = vmul.f32 %v136, %v136
    %v147 = vadd.f32 %v139, %v140
    %v148 = vadd.f32 %v147, %v141
    %v149 = vadd.f32 %v148, %v142
    %v150 = vadd.f32 %v143, %v144
    %v151 = vadd.f32 %v150, %v145
    %v152 = vadd.f32 %v151, %v146
    %v153 = vmul.f32 %v127, %v127
    %v154 = vmul.f32 %v128, %v128
    %v155 = vmul.f32 %v149, %v153
    %v156 = vmul.f32 %v152, %v154
    %v157 = vadd.f32 %v137, %v155
    %v158 = vadd.f32 %v138, %v156
    %159 = vst [vmem:[#allocation2] sm:$0xff] %v157
    %160 = vst [vmem:[#allocation2 + $0x8] sm:$0xff] %v158
    %v161 = vld [vmem:[#allocation3] sm:$0xff]
    %v162 = vld [vmem:[#allocation3 + $0x8] sm:$0xff]
    %v163 = vadd.f32 %v161, %v127
    %v164 = vadd.f32 %v162, %v128
    %165 = vst [vmem:[#allocation3] sm:$0xff] %v163
    %166 = vst [vmem:[#allocation3 + $0x8] sm:$0xff] %v164
    // Predicated region
    $region30: #{tpu_custom_call.1} parent=1 // pred_check
      %p167 = pneg %p71
    $region31: #{tpu_custom_call.1} parent=1 // pred_check_branch
      %169 = sbr.rel (%p167) target = $region33
    $region32: #{tpu_custom_call.1} parent=1 // pred_region
      %v170 = vld [vmem:[#allocation2] sm:$0xff]
      %v171 = vld [vmem:[#allocation2 + $0x8] sm:$0xff]
      %v172 = vrot.slane %v170, 4
      %v173 = vadd.f32 %v170, %v172
      %v174 = vrot.slane %v173, 2
      %v175 = vadd.f32 %v173, %v174
      %v176 = vrot.slane %v175, 1
      %v177 = vadd.f32 %v175, %v176
      %v178 = vrot.slane %v171, 4
      %v179 = vadd.f32 %v171, %v178
      %v180 = vrot.slane %v179, 2
      %v181 = vadd.f32 %v179, %v180
      %v182 = vrot.slane %v181, 1
      %v183 = vadd.f32 %v181, %v182
      %vm186 = vcmask 1041409
      %v187 = vsel %vm186, %v183, %v177
      %189 = vst [vmem:[#allocation10] sm:$0x3] %v187
      %v190 = vld [vmem:[#allocation3] sm:$0xff]
      %v191 = vld [vmem:[#allocation3 + $0x8] sm:$0xff]
      %v192 = vrot.slane %v190, 4
      %v193 = vadd.f32 %v190, %v192
      %v194 = vrot.slane %v193, 2
      %v195 = vadd.f32 %v193, %v194
      %v196 = vrot.slane %v195, 1
      %v197 = vadd.f32 %v195, %v196
      %v198 = vrot.slane %v191, 4
      %v199 = vadd.f32 %v191, %v198
      %v200 = vrot.slane %v199, 2
      %v201 = vadd.f32 %v199, %v200
      %v202 = vrot.slane %v201, 1
      %v203 = vadd.f32 %v201, %v202
      %v206 = vsel %vm186, %v203, %v197
      %208 = vst [vmem:[#allocation11] sm:$0x3] %v206
    $region33: #{tpu_custom_call.1} parent=1 // pred_fallthru
      _
    // Predicated region
    $region34: #{tpu_custom_call.1} parent=1 // pred_check
      _
    $region35: #{tpu_custom_call.1} parent=1 // pred_check_branch
      %210 = sbr.rel (0) target = $region37
    $region36: #{tpu_custom_call.1} parent=1 // pred_region
      %s212 = ssub.s32 32, 32
      %213 = vsyncadd [#allocation6], %s212
      %s215 = sshll.u32 [#allocation10], 4
      %s216 = int_to_ptr.vmem [resolvable:$true] %s215
      %218 = dma.vmem_to_hbm [thread:$0]  %s216, 32, %s3, [#allocation6]
    $region37: #{tpu_custom_call.1} parent=1 // pred_fallthru
      _
    // Predicated region
    $region38: #{tpu_custom_call.1} parent=1 // pred_check
      _
    $region39: #{tpu_custom_call.1} parent=1 // pred_check_branch
      %220 = sbr.rel (0) target = $region41
    $region40: #{tpu_custom_call.1} parent=1 // pred_region
      %s222 = ssub.s32 32, 32
      %223 = vsyncadd [#allocation12], %s222
      %s225 = sshll.u32 [#allocation11], 4
      %s226 = int_to_ptr.vmem [resolvable:$true] %s225
      %228 = dma.vmem_to_hbm [thread:$0]  %s226, 32, %s4, [#allocation12]
    $region41: #{tpu_custom_call.1} parent=1 // pred_fallthru
      _
    // Predicated region
    $region42: #{tpu_custom_call.1} parent=1 // pred_check
      _
    $region43: #{tpu_custom_call.1} parent=1 // pred_check_branch
      %230 = sbr.rel (0) target = $region45
    $region44: #{tpu_custom_call.1} parent=1 // pred_region
      %231 = dma.done [#allocation6], 32
    $region45: #{tpu_custom_call.1} parent=1 // pred_fallthru
      _
    // Predicated region
    $region46: #{tpu_custom_call.1} parent=1 // pred_check
      _
    $region47: #{tpu_custom_call.1} parent=1 // pred_check_branch
      %233 = sbr.rel (0) target = $region49
    $region48: #{tpu_custom_call.1} parent=1 // pred_region
      %234 = dma.done [#allocation12], 32
    $region49: #{tpu_custom_call.1} parent=1 // pred_fallthru
      _
    %235 = vsyncpa [#allocation5], 1
    %236 = vsyncpa [#allocation8], 1
    %237 = vsyncpa [#allocation6], 1
    %238 = vsyncpa [#allocation12], 1

</llo_original>
